<compile_context>
chip_gen: v7x
topology: tpu7x:2x2x1
jax: 0.10.0
libtpu: 0.0.40
codegen_flags: <defaults>
</compile_context>

<pallas_src>
import functools

import jax
import jax.numpy as jnp
from jax.experimental import pallas as pl
from jax.experimental.pallas import tpu as pltpu


def _seg_aux_ce_kernel(seg_ref, aux_ref, lbl_ref,
                       seg_out_ref, aux_out_ref, cnt_out_ref,
                       *, tile_pix, out_w, hw, num_classes):
    """Fused seg+aux CE partial sums for one (image, pixel-tile) block.

    seg_ref / aux_ref: (1, C, TILE_PIX) logits (classes on sublanes, pixels on
    lanes); lbl_ref: (1, 1, TILE_PIX) int32. Outputs are lane-dense partial
    sums of shape (1, 1, OUT_W): masked seg loss, masked aux loss, valid count.
    """
    t = pl.program_id(1)
    rows = tile_pix // out_w

    lbl = lbl_ref[0]                                           # (1, TILE_PIX) int32

    # Validity: in-bounds pixel (ragged last tile) and in-range label.
    pix = jax.lax.broadcasted_iota(jnp.int32, lbl.shape, 1) + t * tile_pix
    valid = (pix < hw) & (lbl >= 0) & (lbl < num_classes)      # (1, TILE_PIX) bool

    # One-hot target mask, hoisted so it is materialized once and shared by
    # both heads (JAX does not CSE broadcast_in_dim).
    cls = jax.lax.broadcasted_iota(jnp.int32, (num_classes, tile_pix), 0)
    onehot = cls == lbl                                        # (C, TILE_PIX) bool

    def lane_fold(row):
        # (1, TILE_PIX) -> (1, OUT_W): fold lane groups with plain vreg adds so
        # only OUT_W (=128) partials per block ever reach HBM.
        return jnp.sum(row.reshape(rows, out_w), axis=0, keepdims=True)

    def per_head(x_ref):
        x = x_ref[0].astype(jnp.float32)                       # (C, TILE_PIX)
        # logsumexp over the (small) class / sublane axis.
        m = jnp.max(x, axis=0, keepdims=True)                  # (1, TILE_PIX)
        lse = m + jnp.log(jnp.sum(jnp.exp(x - m), axis=0, keepdims=True))
        # Target-class logit via the shared one-hot mask (no dynamic gather).
        tgt = jnp.sum(jnp.where(onehot, x, 0.0), axis=0, keepdims=True)
        # where() (not multiply) so NaN/Inf garbage in the ragged tail never
        # leaks into the partial sum.
        return lane_fold(jnp.where(valid, lse - tgt, 0.0))

    seg_out_ref[0] = per_head(seg_ref)
    aux_out_ref[0] = per_head(aux_ref)
    cnt_out_ref[0] = lane_fold(valid.astype(jnp.float32))


def _target_block_bytes():
    """Per-generation f32-bytes budget for one logits block (per head)."""
    # v5e/v6e: 128 MiB physical VMEM -> 4 MiB blocks amortize the ~0.35us/step
    # grid overhead well below 10%. v7x: only 64 MiB VMEM -> stay at 2 MiB.
    try:
        vmem = pltpu.get_tpu_info().vmem_capacity_bytes
        return (4 << 20) if vmem >= (96 << 20) else (2 << 20)
    except Exception:
        return 2 << 20


def _choose_tile_pix(hw, num_classes, target_block_bytes):
    """Pixel (lane) tile: multiple of 128, large enough to amortize per-step
    overhead, small enough to keep >= ~4 pixel tiles for v7x 2-TC balance."""
    if hw <= 128:
        return hw                                   # full-extent lane dim
    hw_ceil = pl.cdiv(hw, 128) * 128
    t = (target_block_bytes // (max(num_classes, 1) * 4)) // 128 * 128
    t = max(128, min(t, 1 << 17))
    # Both grid axes are "parallel"; keep at least ~4 pixel tiles so the two
    # v7x TensorCores stay busy even at batch 1.
    quarter = max(128, (hw_ceil // 4) // 128 * 128)
    return min(t, quarter, hw_ceil)


@jax.jit
def _seg_aux_ce(seg_logits, aux_logits, labelmap):
    """Returns (seg_loss_mean, aux_loss_mean), ignore-label aware."""
    N, C, H, W = seg_logits.shape
    hw = H * W

    # Free views of the NCHW tensors (no HBM round trip). bf16 logits are
    # passed through as-is; the kernel upcasts in VMEM.
    seg = seg_logits.reshape(N, C, hw)
    aux = aux_logits.reshape(N, C, hw)
    lbl = labelmap.reshape(N, 1, hw).astype(jnp.int32)

    tile = _choose_tile_pix(hw, C, _target_block_bytes())
    num_tiles = pl.cdiv(hw, tile)
    out_w = 128 if tile % 128 == 0 else tile        # lane-dense partial width

    kernel = functools.partial(
        _seg_aux_ce_kernel, tile_pix=tile, out_w=out_w, hw=hw, num_classes=C)

    out_shape = tuple(
        jax.ShapeDtypeStruct((N, 1, num_tiles * out_w), jnp.float32)
        for _ in range(3))                          # seg partials, aux partials, counts
    logits_spec = pl.BlockSpec((1, C, tile), lambda n, t: (n, 0, t))
    lbl_spec = pl.BlockSpec((1, 1, tile), lambda n, t: (n, 0, t))
    out_spec = pl.BlockSpec((1, 1, out_w), lambda n, t: (n, 0, t))

    seg_part, aux_part, cnt_part = pl.pallas_call(
        kernel,
        out_shape=out_shape,
        grid_spec=pltpu.PrefetchScalarGridSpec(
            num_scalar_prefetch=0,
            grid=(N, num_tiles),
            in_specs=[logits_spec, logits_spec, lbl_spec],
            out_specs=[out_spec, out_spec, out_spec],
        ),
        compiler_params=pltpu.CompilerParams(
            dimension_semantics=("parallel", "parallel"),
            # 2 heads x 2 pipeline buffers x tile + elementwise temporaries;
            # raise above the v5e 16 MiB default scoped limit, stay well under
            # the v7x 64 MiB physical VMEM.
            vmem_limit_bytes=48 << 20),
    )(seg, aux, lbl)

    # Tiny scalar glue in plain JAX (final reduce of 3 * N * num_tiles * 128).
    cnt = jnp.maximum(jnp.sum(cnt_part), 1.0)
    seg_loss = jnp.sum(seg_part) / cnt
    aux_loss = jnp.sum(aux_part) / cnt
    return seg_loss, aux_loss


def seg_aux_ce_loss(out_dict, data_dict, loss_weights):
    """Forward pass of SegAuxCELoss (seg CE + weighted aux CE)."""
    # TODO(synk): BaseCELoss bilinearly resizes logits when their spatial size
    # differs from the labelmap; inputs here are assumed already label-sized.
    seg_loss, aux_loss = _seg_aux_ce(
        out_dict["out"], out_dict["aux_out"], data_dict["labelmap"])
    loss = loss_weights["seg_loss"] * seg_loss + loss_weights["aux_loss"] * aux_loss
    return dict(loss=loss, aux_loss=aux_loss, seg_loss=seg_loss)


def _ce_loss_mean_ref(logits_nchw, labelmap):
    """Pure-JAX reference for validation."""
    N, C, H, W = logits_nchw.shape
    x = jnp.transpose(logits_nchw, (0, 2, 3, 1)).reshape(-1, C).astype(jnp.float32)
    lbl = labelmap.reshape(-1)
    lse = jax.scipy.special.logsumexp(x, axis=-1)
    tgt = jnp.take_along_axis(x, jnp.clip(lbl, 0, C - 1)[:, None], axis=-1)[:, 0]
    valid = (lbl >= 0) & (lbl < C)
    per = jnp.where(valid, lse - tgt, 0.0)
    return jnp.sum(per) / jnp.maximum(jnp.sum(valid.astype(jnp.float32)), 1.0)


if __name__ == "__main__":
    loss_weights = {"seg_loss": 1.0, "aux_loss": 0.4}  # deterministic configer values

    def check(N, C, H, W, *, add_ignore=False, dtype=jnp.float32, rtol=1e-4):
        k1, k2, k3 = jax.random.split(jax.random.PRNGKey(0), 3)
        out_logits = jax.random.normal(k1, (N, C, H, W), dtype=jnp.float32).astype(dtype)
        aux_logits = jax.random.normal(k2, (N, C, H, W), dtype=jnp.float32).astype(dtype)
        labelmap = jax.random.randint(k3, (N, H, W), 0, C, dtype=jnp.int32)
        if add_ignore:
            labelmap = labelmap.at[0, :2, :].set(-1)        # ignore-label pixels

        result = seg_aux_ce_loss({"out": out_logits, "aux_out": aux_logits},
                                 {"labelmap": labelmap}, loss_weights)
        jax.block_until_ready(result)

        seg_ref = _ce_loss_mean_ref(out_logits, labelmap)
        aux_ref = _ce_loss_mean_ref(aux_logits, labelmap)
        loss_ref = (loss_weights["seg_loss"] * seg_ref
                    + loss_weights["aux_loss"] * aux_ref)
        assert jnp.allclose(result["seg_loss"], seg_ref, rtol=rtol, atol=1e-5)
        assert jnp.allclose(result["aux_loss"], aux_ref, rtol=rtol, atol=1e-5)
        assert jnp.allclose(result["loss"], loss_ref, rtol=rtol, atol=1e-5)

    check(2, 4, 16, 16)                                   # primary small example
    check(2, 4, 16, 16, add_ignore=True)                  # ignore-label masking
    check(2, 4, 64, 64, add_ignore=True)                  # multi-row lane fold (rows=8)
    check(1, 4, 18, 18)                                   # ragged last pixel tile
    check(2, 4, 64, 64, dtype=jnp.bfloat16)               # bf16 logits pass-through

    print("KERNEL_OK")
</pallas_src>

<mosaic_0001>
module attributes {stable_mosaic.version = 11 : i64} {
  func.func @_seg_aux_ce_kernel(%arg0: i32, %arg1: i32, %arg2: memref<1x4x128xf32, #tpu.memory_space<vmem>>, %arg3: memref<1x4x128xf32, #tpu.memory_space<vmem>>, %arg4: memref<1x1x128xi32, #tpu.memory_space<vmem>>, %arg5: memref<1x1x128xf32, #tpu.memory_space<vmem>>, %arg6: memref<1x1x128xf32, #tpu.memory_space<vmem>>, %arg7: memref<1x1x128xf32, #tpu.memory_space<vmem>>) attributes {dimension_semantics = [#tpu.dimension_semantics<parallel>, #tpu.dimension_semantics<parallel>], iteration_bounds = array<i64: 2, 2>, scalar_prefetch = 0 : i64, scratch_operands = 0 : i64, tpu.core_type = #tpu.core_type<tc>, window_params = [{transform_indices = @transform_0, window_bounds = array<i64: 1, 4, 128>}, {transform_indices = @transform_1, window_bounds = array<i64: 1, 4, 128>}, {transform_indices = @transform_2, window_bounds = array<i64: 1, 1, 128>}, {transform_indices = @transform_3, window_bounds = array<i64: 1, 1, 128>}, {transform_indices = @transform_4, window_bounds = array<i64: 1, 1, 128>}, {transform_indices = @transform_5, window_bounds = array<i64: 1, 1, 128>}]} {
    %c0 = arith.constant 0 : index
    %c0_0 = arith.constant 0 : index
    %c0_1 = arith.constant 0 : index
    %0 = vector.load %arg4[%c0, %c0_0, %c0_1] : memref<1x1x128xi32, #tpu.memory_space<vmem>>, vector<1x1x128xi32>
    %1 = vector.shape_cast %0 : vector<1x1x128xi32> to vector<1x128xi32>
    %2 = tpu.iota {dimensions = array<i32: 1>} : vector<1x128xi32>
    %c128_i32 = arith.constant 128 : i32
    %3 = arith.muli %arg1, %c128_i32 : i32
    %4 = vector.broadcast %3 : i32 to vector<1x128xi32>
    %5 = arith.addi %2, %4 : vector<1x128xi32>
    %c256_i32 = arith.constant 256 : i32
    %6 = vector.broadcast %c256_i32 : i32 to vector<1x128xi32>
    %7 = arith.cmpi slt, %5, %6 : vector<1x128xi32>
    %c0_i32 = arith.constant 0 : i32
    %8 = vector.broadcast %c0_i32 : i32 to vector<1x128xi32>
    %9 = arith.cmpi sge, %1, %8 : vector<1x128xi32>
    %10 = arith.andi %7, %9 : vector<1x128xi1>
    %c4_i32 = arith.constant 4 : i32
    %11 = vector.broadcast %c4_i32 : i32 to vector<1x128xi32>
    %12 = arith.cmpi slt, %1, %11 : vector<1x128xi32>
    %13 = arith.andi %10, %12 : vector<1x128xi1>
    %14 = tpu.iota {dimensions = array<i32: 0>} : vector<4x128xi32>
    %15 = vector.broadcast %1 : vector<1x128xi32> to vector<4x128xi32>
    %16 = arith.cmpi eq, %14, %15 : vector<4x128xi32>
    %c0_2 = arith.constant 0 : index
    %c0_3 = arith.constant 0 : index
    %c0_4 = arith.constant 0 : index
    %17 = vector.load %arg2[%c0_2, %c0_3, %c0_4] : memref<1x4x128xf32, #tpu.memory_space<vmem>>, vector<1x4x128xf32>
    %18 = vector.shape_cast %17 : vector<1x4x128xf32> to vector<4x128xf32>
    %cst = arith.constant dense<0xFF800000> : vector<128xf32>
    %19 = vector.multi_reduction <maximumf>, %18, %cst [0] : vector<4x128xf32> to vector<128xf32>
    %20 = vector.shape_cast %19 : vector<128xf32> to vector<1x128xf32>
    %21 = vector.broadcast %20 : vector<1x128xf32> to vector<4x128xf32>
    %22 = arith.subf %18, %21 : vector<4x128xf32>
    %23 = math.exp %22 : vector<4x128xf32>
    %cst_5 = arith.constant dense<0.000000e+00> : vector<128xf32>
    %24 = vector.multi_reduction <add>, %23, %cst_5 [0] : vector<4x128xf32> to vector<128xf32>
    %25 = vector.shape_cast %24 : vector<128xf32> to vector<1x128xf32>
    %26 = math.log %25 : vector<1x128xf32>
    %27 = arith.addf %20, %26 : vector<1x128xf32>
    %cst_6 = arith.constant 0.000000e+00 : f32
    %28 = vector.broadcast %cst_6 : f32 to vector<4x128xf32>
    %29 = arith.select %16, %18, %28 : vector<4x128xi1>, vector<4x128xf32>
    %cst_7 = arith.constant dense<0.000000e+00> : vector<128xf32>
    %30 = vector.multi_reduction <add>, %29, %cst_7 [0] : vector<4x128xf32> to vector<128xf32>
    %31 = vector.shape_cast %30 : vector<128xf32> to vector<1x128xf32>
    %32 = arith.subf %27, %31 : vector<1x128xf32>
    %cst_8 = arith.constant 0.000000e+00 : f32
    %33 = vector.broadcast %cst_8 : f32 to vector<1x128xf32>
    %34 = arith.select %13, %32, %33 : vector<1x128xi1>, vector<1x128xf32>
    %cst_9 = arith.constant dense<0.000000e+00> : vector<128xf32>
    %35 = vector.multi_reduction <add>, %34, %cst_9 [0] : vector<1x128xf32> to vector<128xf32>
    %36 = vector.shape_cast %35 : vector<128xf32> to vector<1x128xf32>
    %c0_10 = arith.constant 0 : index
    %c0_11 = arith.constant 0 : index
    %c0_12 = arith.constant 0 : index
    %37 = vector.load %arg5[%c0_10, %c0_11, %c0_12] : memref<1x1x128xf32, #tpu.memory_space<vmem>>, vector<1x1x128xf32>
    %38 = vector.shape_cast %37 : vector<1x1x128xf32> to vector<1x128xf32>
    %39 = vector.shape_cast %36 : vector<1x128xf32> to vector<1x1x128xf32>
    tpu.vector_store %arg5[%c0_10, %c0_11, %c0_12], %39 {strides = array<i32>} : memref<1x1x128xf32, #tpu.memory_space<vmem>>, vector<1x1x128xf32>,
    %c0_13 = arith.constant 0 : index
    %c0_14 = arith.constant 0 : index
    %c0_15 = arith.constant 0 : index
    %40 = vector.load %arg3[%c0_13, %c0_14, %c0_15] : memref<1x4x128xf32, #tpu.memory_space<vmem>>, vector<1x4x128xf32>
    %41 = vector.shape_cast %40 : vector<1x4x128xf32> to vector<4x128xf32>
    %cst_16 = arith.constant dense<0xFF800000> : vector<128xf32>
    %42 = vector.multi_reduction <maximumf>, %41, %cst_16 [0] : vector<4x128xf32> to vector<128xf32>
    %43 = vector.shape_cast %42 : vector<128xf32> to vector<1x128xf32>
    %44 = vector.broadcast %43 : vector<1x128xf32> to vector<4x128xf32>
    %45 = arith.subf %41, %44 : vector<4x128xf32>
    %46 = math.exp %45 : vector<4x128xf32>
    %cst_17 = arith.constant dense<0.000000e+00> : vector<128xf32>
    %47 = vector.multi_reduction <add>, %46, %cst_17 [0] : vector<4x128xf32> to vector<128xf32>
    %48 = vector.shape_cast %47 : vector<128xf32> to vector<1x128xf32>
    %49 = math.log %48 : vector<1x128xf32>
    %50 = arith.addf %43, %49 : vector<1x128xf32>
    %cst_18 = arith.constant 0.000000e+00 : f32
    %51 = vector.broadcast %cst_18 : f32 to vector<4x128xf32>
    %52 = arith.select %16, %41, %51 : vector<4x128xi1>, vector<4x128xf32>
    %cst_19 = arith.constant dense<0.000000e+00> : vector<128xf32>
    %53 = vector.multi_reduction <add>, %52, %cst_19 [0] : vector<4x128xf32> to vector<128xf32>
    %54 = vector.shape_cast %53 : vector<128xf32> to vector<1x128xf32>
    %55 = arith.subf %50, %54 : vector<1x128xf32>
    %cst_20 = arith.constant 0.000000e+00 : f32
    %56 = vector.broadcast %cst_20 : f32 to vector<1x128xf32>
    %57 = arith.select %13, %55, %56 : vector<1x128xi1>, vector<1x128xf32>
    %cst_21 = arith.constant dense<0.000000e+00> : vector<128xf32>
    %58 = vector.multi_reduction <add>, %57, %cst_21 [0] : vector<1x128xf32> to vector<128xf32>
    %59 = vector.shape_cast %58 : vector<128xf32> to vector<1x128xf32>
    %c0_22 = arith.constant 0 : index
    %c0_23 = arith.constant 0 : index
    %c0_24 = arith.constant 0 : index
    %60 = vector.load %arg6[%c0_22, %c0_23, %c0_24] : memref<1x1x128xf32, #tpu.memory_space<vmem>>, vector<1x1x128xf32>
    %61 = vector.shape_cast %60 : vector<1x1x128xf32> to vector<1x128xf32>
    %62 = vector.shape_cast %59 : vector<1x128xf32> to vector<1x1x128xf32>
    tpu.vector_store %arg6[%c0_22, %c0_23, %c0_24], %62 {strides = array<i32>} : memref<1x1x128xf32, #tpu.memory_space<vmem>>, vector<1x1x128xf32>,
    %63 = arith.extui %13 : vector<1x128xi1> to vector<1x128xi32>
    %64 = arith.sitofp %63 : vector<1x128xi32> to vector<1x128xf32>
    %cst_25 = arith.constant dense<0.000000e+00> : vector<128xf32>
    %65 = vector.multi_reduction <add>, %64, %cst_25 [0] : vector<1x128xf32> to vector<128xf32>
    %66 = vector.shape_cast %65 : vector<128xf32> to vector<1x128xf32>
    %c0_26 = arith.constant 0 : index
    %c0_27 = arith.constant 0 : index
    %c0_28 = arith.constant 0 : index
    %67 = vector.load %arg7[%c0_26, %c0_27, %c0_28] : memref<1x1x128xf32, #tpu.memory_space<vmem>>, vector<1x1x128xf32>
    %68 = vector.shape_cast %67 : vector<1x1x128xf32> to vector<1x128xf32>
    %69 = vector.shape_cast %66 : vector<1x128xf32> to vector<1x1x128xf32>
    tpu.vector_store %arg7[%c0_26, %c0_27, %c0_28], %69 {strides = array<i32>} : memref<1x1x128xf32, #tpu.memory_space<vmem>>, vector<1x1x128xf32>,
    return
  }
  func.func @transform_0(%arg0: i32, %arg1: i32) -> (i32, i32, i32) {
    %c0_i32 = arith.constant 0 : i32
    %c0_i32_0 = arith.constant 0 : i32
    return %arg0, %c0_i32, %arg1 : i32, i32, i32
  }
  func.func @transform_1(%arg0: i32, %arg1: i32) -> (i32, i32, i32) {
    %c0_i32 = arith.constant 0 : i32
    %c0_i32_0 = arith.constant 0 : i32
    return %arg0, %c0_i32, %arg1 : i32, i32, i32
  }
  func.func @transform_2(%arg0: i32, %arg1: i32) -> (i32, i32, i32) {
    %c0_i32 = arith.constant 0 : i32
    %c0_i32_0 = arith.constant 0 : i32
    return %arg0, %c0_i32, %arg1 : i32, i32, i32
  }
  func.func @transform_3(%arg0: i32, %arg1: i32) -> (i32, i32, i32) {
    %c0_i32 = arith.constant 0 : i32
    %c0_i32_0 = arith.constant 0 : i32
    return %arg0, %c0_i32, %arg1 : i32, i32, i32
  }
  func.func @transform_4(%arg0: i32, %arg1: i32) -> (i32, i32, i32) {
    %c0_i32 = arith.constant 0 : i32
    %c0_i32_0 = arith.constant 0 : i32
    return %arg0, %c0_i32, %arg1 : i32, i32, i32
  }
  func.func @transform_5(%arg0: i32, %arg1: i32) -> (i32, i32, i32) {
    %c0_i32 = arith.constant 0 : i32
    %c0_i32_0 = arith.constant 0 : i32
    return %arg0, %c0_i32, %arg1 : i32, i32, i32
  }
}

</mosaic_0001>

<llo_original>
// kernel: _seg_aux_ce.1
$region0: #{_seg_aux_ce.1}
  #allocation0 [shape = 'u32[]', space=smem, size = 0x4, offset = 0x4, fixed_abs, tag = 'smem constant byte address 0x4 - core index']
  #allocation1 [shape = 'u32[144,128]{1,0:T(1,128)}', space=vmem, size = 0x12000, scoped, tag = 'internal scratch']
  %s0 = inlined_call_operand.vmem [shape: f32[2,4,256], index: 0, kind: input, shape index: {}]
  %s1 = inlined_call_operand.vmem [shape: f32[2,4,256], index: 1, kind: input, shape index: {}]
  %s2 = inlined_call_operand.vmem [shape: s32[2,1,256], index: 2, kind: input, shape index: {}]
  %s3 = inlined_call_operand.vmem [shape: f32[2,1,256], index: 3, kind: output, shape index: {0}]
  %s4 = inlined_call_operand.vmem [shape: f32[2,1,256], index: 4, kind: output, shape index: {1}]
  %s5 = inlined_call_operand.vmem [shape: f32[2,1,256], index: 5, kind: output, shape index: {2}]
  %6 = xla_tuple %s3, %s4, %s5
  %s7 = sld [smem:[#allocation0]]
  $region61: #{_seg_aux_ce.1} parent=0
    _
  %s9 = ssub.s32 1, %s7
  %s10 = scalar_select 0, %s9, %s7
  loop: start=0, step=1, limit=6
  $region2: #{_seg_aux_ce.1} parent=0 // loop_pre_header
    _
  $region3: #{_seg_aux_ce.1} parent=0 // loop_header
    %s12 = sphi 0, %s16
    %p13 = scmp.ge.s32.totalorder %s12, 6
    %s19 = sphi 0, %s31
    %s20 = sphi 0, %s27
    %s21 = sphi 0, %s19
    %s22 = sphi 0, %s20
    %s23 = sphi 0, %s21
    %s24 = sphi 0, %s22
    %s36 = sphi 0, %s38
    %s39 = sphi 0, %s36
    %s40 = sphi 0, %s39
    %s56 = sphi 0, %s40
    %s64 = sphi 0, %s66
    %s67 = sphi 0, %s64
    %s68 = sphi 0, %s67
    %s84 = sphi 0, %s68
    %s92 = sphi 0, %s94
    %s95 = sphi 0, %s92
    %s96 = sphi 0, %s95
    %s112 = sphi 0, %s96
    %s120 = sphi 0, %s122
    %s123 = sphi 0, %s120
    %s124 = sphi 0, %s123
    %s140 = sphi 0, %s124
    %s148 = sphi 0, %s150
    %s151 = sphi 0, %s148
    %s152 = sphi 0, %s151
    %s168 = sphi 0, %s152
    %s176 = sphi 0, %s178
    %s179 = sphi 0, %s176
    %s180 = sphi 0, %s179
    %s196 = sphi 0, %s180
  $region4: #{_seg_aux_ce.1} parent=0 // loop_header_branch
    %15 = sbr.rel (%p13) target = $region8
  $region5: #{_seg_aux_ce.1} parent=0 // loop_body
    %s17 = ssub.s32 %s12, 1
    %s18 = ssub.s32 %s12, 2
    %s25 = sadd.s32 1, %s20
    %p26 = scmp.ge.s32.totalorder %s25, 2
    %s27 = scalar_select %p26, 0, %s25
    %s28 = sadd.s32 1, %s19
    %s29 = scalar_select %p26, %s28, %s19
    %p30 = scmp.ge.s32.totalorder %s29, 2
    %s31 = scalar_select %p30, 0, %s29
    %s32 = ssub.s32 %s19, %s31
    %s33 = ssub.s32 %s20, %s27
    %s34 = sor.u32 %s32, %s33
    %p35 = scmp.eq.s32.totalorder %s34, 0
    %s37 = sadd.s32 %s36, 1
    %s38 = scalar_select %p35, %s36, %s37
    %p41 = pneg %p35
    %p42 = scmp.eq.s32.totalorder %s12, 3
    %p43 = por %p41, %p42
    %p44 = scmp.ne.s32.totalorder %s36, %s39
    %p45 = scmp.eq.s32.totalorder %s12, 0
    %p46 = por %p44, %p45
    %p47 = scmp.ne.s32.totalorder %s36, %s39
    %p48 = scmp.eq.s32.totalorder %s17, 3
    %p49 = por %p47, %p48
    %p50 = scmp.ne.s32.totalorder %s39, %s40
    %p51 = scmp.eq.s32.totalorder %s17, 0
    %p52 = por %p50, %p51
    %p53 = scmp.ne.s32.totalorder %s39, %s40
    %p54 = scmp.eq.s32.totalorder %s18, 3
    %p55 = por %p53, %p54
    %p57 = scmp.ne.s32.totalorder %s40, %s56
    %p58 = scmp.eq.s32.totalorder %s18, 0
    %p59 = por %p57, %p58
    %s60 = ssub.s32 %s19, %s31
    %s61 = ssub.s32 %s20, %s27
    %s62 = sor.u32 %s60, %s61
    %p63 = scmp.eq.s32.totalorder %s62, 0
    %s65 = sadd.s32 %s64, 1
    %s66 = scalar_select %p63, %s64, %s65
    %p69 = pneg %p63
    %p70 = scmp.eq.s32.totalorder %s12, 3
    %p71 = por %p69, %p70
    %p72 = scmp.ne.s32.totalorder %s64, %s67
    %p73 = scmp.eq.s32.totalorder %s12, 0
    %p74 = por %p72, %p73
    %p75 = scmp.ne.s32.totalorder %s64, %s67
    %p76 = scmp.eq.s32.totalorder %s17, 3
    %p77 = por %p75, %p76
    %p78 = scmp.ne.s32.totalorder %s67, %s68
    %p79 = scmp.eq.s32.totalorder %s17, 0
    %p80 = por %p78, %p79
    %p81 = scmp.ne.s32.totalorder %s67, %s68
    %p82 = scmp.eq.s32.totalorder %s18, 3
    %p83 = por %p81, %p82
    %p85 = scmp.ne.s32.totalorder %s68, %s84
    %p86 = scmp.eq.s32.totalorder %s18, 0
    %p87 = por %p85, %p86
    %s88 = ssub.s32 %s19, %s31
    %s89 = ssub.s32 %s20, %s27
    %s90 = sor.u32 %s88, %s89
    %p91 = scmp.eq.s32.totalorder %s90, 0
    %s93 = sadd.s32 %s92, 1
    %s94 = scalar_select %p91, %s92, %s93
    %p97 = pneg %p91
    %p98 = scmp.eq.s32.totalorder %s12, 3
    %p99 = por %p97, %p98
    %p100 = scmp.ne.s32.totalorder %s92, %s95
    %p101 = scmp.eq.s32.totalorder %s12, 0
    %p102 = por %p100, %p101
    %p103 = scmp.ne.s32.totalorder %s92, %s95
    %p104 = scmp.eq.s32.totalorder %s17, 3
    %p105 = por %p103, %p104
    %p106 = scmp.ne.s32.totalorder %s95, %s96
    %p107 = scmp.eq.s32.totalorder %s17, 0
    %p108 = por %p106, %p107
    %p109 = scmp.ne.s32.totalorder %s95, %s96
    %p110 = scmp.eq.s32.totalorder %s18, 3
    %p111 = por %p109, %p110
    %p113 = scmp.ne.s32.totalorder %s96, %s112
    %p114 = scmp.eq.s32.totalorder %s18, 0
    %p115 = por %p113, %p114
    %s116 = ssub.s32 %s19, %s31
    %s117 = ssub.s32 %s20, %s27
    %s118 = sor.u32 %s116, %s117
    %p119 = scmp.eq.s32.totalorder %s118, 0
    %s121 = sadd.s32 %s120, 1
    %s122 = scalar_select %p119, %s120, %s121
    %p125 = pneg %p119
    %p126 = scmp.eq.s32.totalorder %s12, 3
    %p127 = por %p125, %p126
    %p128 = scmp.ne.s32.totalorder %s120, %s123
    %p129 = scmp.eq.s32.totalorder %s12, 0
    %p130 = por %p128, %p129
    %p131 = scmp.ne.s32.totalorder %s120, %s123
    %p132 = scmp.eq.s32.totalorder %s17, 3
    %p133 = por %p131, %p132
    %p134 = scmp.ne.s32.totalorder %s123, %s124
    %p135 = scmp.eq.s32.totalorder %s17, 0
    %p136 = por %p134, %p135
    %p137 = scmp.ne.s32.totalorder %s123, %s124
    %p138 = scmp.eq.s32.totalorder %s18, 3
    %p139 = por %p137, %p138
    %p141 = scmp.ne.s32.totalorder %s124, %s140
    %p142 = scmp.eq.s32.totalorder %s18, 0
    %p143 = por %p141, %p142
    %s144 = ssub.s32 %s19, %s31
    %s145 = ssub.s32 %s20, %s27
    %s146 = sor.u32 %s144, %s145
    %p147 = scmp.eq.s32.totalorder %s146, 0
    %s149 = sadd.s32 %s148, 1
    %s150 = scalar_select %p147, %s148, %s149
    %p153 = pneg %p147
    %p154 = scmp.eq.s32.totalorder %s12, 3
    %p155 = por %p153, %p154
    %p156 = scmp.ne.s32.totalorder %s148, %s151
    %p157 = scmp.eq.s32.totalorder %s12, 0
    %p158 = por %p156, %p157
    %p159 = scmp.ne.s32.totalorder %s148, %s151
    %p160 = scmp.eq.s32.totalorder %s17, 3
    %p161 = por %p159, %p160
    %p162 = scmp.ne.s32.totalorder %s151, %s152
    %p163 = scmp.eq.s32.totalorder %s17, 0
    %p164 = por %p162, %p163
    %p165 = scmp.ne.s32.totalorder %s151, %s152
    %p166 = scmp.eq.s32.totalorder %s18, 3
    %p167 = por %p165, %p166
    %p169 = scmp.ne.s32.totalorder %s152, %s168
    %p170 = scmp.eq.s32.totalorder %s18, 0
    %p171 = por %p169, %p170
    %s172 = ssub.s32 %s19, %s31
    %s173 = ssub.s32 %s20, %s27
    %s174 = sor.u32 %s172, %s173
    %p175 = scmp.eq.s32.totalorder %s174, 0
    %s177 = sadd.s32 %s176, 1
    %s178 = scalar_select %p175, %s176, %s177
    %p181 = pneg %p175
    %p182 = scmp.eq.s32.totalorder %s12, 3
    %p183 = por %p181, %p182
    %p184 = scmp.ne.s32.totalorder %s176, %s179
    %p185 = scmp.eq.s32.totalorder %s12, 0
    %p186 = por %p184, %p185
    %p187 = scmp.ne.s32.totalorder %s176, %s179
    %p188 = scmp.eq.s32.totalorder %s17, 3
    %p189 = por %p187, %p188
    %p190 = scmp.ne.s32.totalorder %s179, %s180
    %p191 = scmp.eq.s32.totalorder %s17, 0
    %p192 = por %p190, %p191
    %p193 = scmp.ne.s32.totalorder %s179, %s180
    %p194 = scmp.eq.s32.totalorder %s18, 3
    %p195 = por %p193, %p194
    %p197 = scmp.ne.s32.totalorder %s180, %s196
    %p198 = scmp.eq.s32.totalorder %s18, 0
    %p199 = por %p197, %p198
    %p200 = scmp.le.s32.totalorder 1, %s12
    %p201 = scmp.lt.s32.totalorder %s12, 5
    %p202 = pnand %p200, %p201
    %p203 = pneg %p202
    // Predicated region
    $region9: #{_seg_aux_ce.1} parent=5 // pred_check
      _
    $region10: #{_seg_aux_ce.1} parent=5 // pred_check_branch
      %205 = sbr.rel (%p202) target = $region12
    $region11: #{_seg_aux_ce.1} parent=5 // pred_region
      %s206 = ssub.s32 %s12, 1
    $region12: #{_seg_aux_ce.1} parent=5 // pred_fallthru
      _
    %p207 = scmp.lt.s32.totalorder %s12, 4
    // Predicated region
    $region13: #{_seg_aux_ce.1} parent=5 // pred_check
      %p208 = pneg %p207
    $region14: #{_seg_aux_ce.1} parent=5 // pred_check_branch
      %210 = sbr.rel (%p208) target = $region16
    $region15: #{_seg_aux_ce.1} parent=5 // pred_region
      // Predicated region
      $region17: #{_seg_aux_ce.1} parent=15 // pred_check
        %p211 = pneg %p46
      $region18: #{_seg_aux_ce.1} parent=15 // pred_check_branch
        %213 = sbr.rel (%p211) target = $region20
      $region19: #{_seg_aux_ce.1} parent=15 // pred_region
        %p214 = scmp.lt.s32.totalorder %s19, 1
        %s215 = scalar_select %p214, %s19, 1
        %p216 = scmp.lt.s32.totalorder %s20, 1
        %s217 = scalar_select %p216, %s20, 1
        %s218 = smul.addr %s215, 2
        %s219 = sadd.s32 %s217, %s218
        %s220 = smul.addr %s219, 4
        %s221 = scalar_lea.vmem %s0, %s220
      $region20: #{_seg_aux_ce.1} parent=15 // pred_fallthru
        _
      // Predicated region
      $region21: #{_seg_aux_ce.1} parent=15 // pred_check
        %p222 = pneg %p74
      $region22: #{_seg_aux_ce.1} parent=15 // pred_check_branch
        %224 = sbr.rel (%p222) target = $region24
      $region23: #{_seg_aux_ce.1} parent=15 // pred_region
        %p225 = scmp.lt.s32.totalorder %s19, 1
        %s226 = scalar_select %p225, %s19, 1
        %p227 = scmp.lt.s32.totalorder %s20, 1
        %s228 = scalar_select %p227, %s20, 1
        %s229 = smul.addr %s226, 2
        %s230 = sadd.s32 %s228, %s229
        %s231 = smul.addr %s230, 4
        %s232 = scalar_lea.vmem %s1, %s231
      $region24: #{_seg_aux_ce.1} parent=15 // pred_fallthru
        _
      // Predicated region
      $region25: #{_seg_aux_ce.1} parent=15 // pred_check
        %p233 = pneg %p102
      $region26: #{_seg_aux_ce.1} parent=15 // pred_check_branch
        %235 = sbr.rel (%p233) target = $region28
      $region27: #{_seg_aux_ce.1} parent=15 // pred_region
        %p236 = scmp.lt.s32.totalorder %s19, 1
        %s237 = scalar_select %p236, %s19, 1
        %p238 = scmp.lt.s32.totalorder %s20, 1
        %s239 = scalar_select %p238, %s20, 1
        %s240 = smul.addr %s237, 2
        %s241 = sadd.s32 %s239, %s240
        %s242 = scalar_lea.vmem %s2, %s241
      $region28: #{_seg_aux_ce.1} parent=15 // pred_fallthru
        _
    $region16: #{_seg_aux_ce.1} parent=5 // pred_fallthru
      _
    %p243 = scmp.le.s32.totalorder 1, %s12
    %p244 = scmp.lt.s32.totalorder %s12, 5
    %p245 = pnand %p243, %p244
    %p246 = pneg %p245
    // Predicated region
    $region29: #{_seg_aux_ce.1} parent=5 // pred_check
      _
    $region30: #{_seg_aux_ce.1} parent=5 // pred_check_branch
      %248 = sbr.rel (%p245) target = $region32
    $region31: #{_seg_aux_ce.1} parent=5 // pred_region
      %s249 = ssub.s32 %s12, 1
      %p250 = scmp.lt.s32.totalorder %s21, 1
      %s251 = scalar_select %p250, %s21, 1
      %p252 = scmp.lt.s32.totalorder %s22, 1
      %s253 = scalar_select %p252, %s22, 1
      %s254 = smul.addr %s251, 2
      %s255 = sadd.s32 %s253, %s254
      %s256 = smul.addr %s255, 4
      %s257 = scalar_lea.vmem %s0, %s256
      %p258 = pneg %p52
      %p259 = pneg %p49
      %p260 = scmp.lt.s32.totalorder %s21, 1
      %s261 = scalar_select %p260, %s21, 1
      %p262 = scmp.lt.s32.totalorder %s22, 1
      %s263 = scalar_select %p262, %s22, 1
      %s264 = smul.addr %s261, 2
      %s265 = sadd.s32 %s263, %s264
      %s266 = smul.addr %s265, 4
      %s267 = scalar_lea.vmem %s1, %s266
      %p268 = pneg %p80
      %p269 = pneg %p77
      %p270 = scmp.lt.s32.totalorder %s21, 1
      %s271 = scalar_select %p270, %s21, 1
      %p272 = scmp.lt.s32.totalorder %s22, 1
      %s273 = scalar_select %p272, %s22, 1
      %s274 = smul.addr %s271, 2
      %s275 = sadd.s32 %s273, %s274
      %s276 = scalar_lea.vmem %s2, %s275
      %p277 = pneg %p108
      %p278 = pneg %p105
      %p279 = pneg %p136
      %p280 = pneg %p133
      %p281 = scmp.lt.s32.totalorder %s21, 1
      %s282 = scalar_select %p281, %s21, 1
      %p283 = scmp.lt.s32.totalorder %s22, 1
      %s284 = scalar_select %p283, %s22, 1
      %s285 = smul.addr %s282, 2
      %s286 = sadd.s32 %s284, %s285
      %s287 = scalar_lea.vmem %s3, %s286
      %p288 = pneg %p164
      %p289 = pneg %p161
      %p290 = scmp.lt.s32.totalorder %s21, 1
      %s291 = scalar_select %p290, %s21, 1
      %p292 = scmp.lt.s32.totalorder %s22, 1
      %s293 = scalar_select %p292, %s22, 1
      %s294 = smul.addr %s291, 2
      %s295 = sadd.s32 %s293, %s294
      %s296 = scalar_lea.vmem %s4, %s295
      %p297 = pneg %p192
      %p298 = pneg %p189
      %p299 = scmp.lt.s32.totalorder %s21, 1
      %s300 = scalar_select %p299, %s21, 1
      %p301 = scmp.lt.s32.totalorder %s22, 1
      %s302 = scalar_select %p301, %s22, 1
      %s303 = smul.addr %s300, 2
      %s304 = sadd.s32 %s302, %s303
      %s305 = scalar_lea.vmem %s5, %s304
      %p306 = scmp.lt.s32.totalorder %s21, 1
      %s307 = scalar_select %p306, %s21, 1
      %p308 = scmp.lt.s32.totalorder %s22, 1
      %s309 = scalar_select %p308, %s22, 1
      %s310 = smul.addr %s307, 2
      %s311 = sadd.s32 %s309, %s310
      %s312 = smul.addr %s311, 4
      %s313 = scalar_lea.vmem %s0, %s312
      %p314 = scmp.lt.s32.totalorder %s21, 1
      %s315 = scalar_select %p314, %s21, 1
      %p316 = scmp.lt.s32.totalorder %s22, 1
      %s317 = scalar_select %p316, %s22, 1
      %s318 = smul.addr %s315, 2
      %s319 = sadd.s32 %s317, %s318
      %s320 = smul.addr %s319, 4
      %s321 = scalar_lea.vmem %s1, %s320
      %p322 = scmp.lt.s32.totalorder %s21, 1
      %s323 = scalar_select %p322, %s21, 1
      %p324 = scmp.lt.s32.totalorder %s22, 1
      %s325 = scalar_select %p324, %s22, 1
      %s326 = smul.addr %s323, 2
      %s327 = sadd.s32 %s325, %s326
      %s328 = scalar_lea.vmem %s2, %s327
      %p329 = scmp.lt.s32.totalorder %s21, 1
      %s330 = scalar_select %p329, %s21, 1
      %p331 = scmp.lt.s32.totalorder %s22, 1
      %s332 = scalar_select %p331, %s22, 1
      %s333 = smul.addr %s330, 2
      %s334 = sadd.s32 %s332, %s333
      %s335 = scalar_lea.vmem %s3, %s334
      %p336 = scmp.lt.s32.totalorder %s21, 1
      %s337 = scalar_select %p336, %s21, 1
      %p338 = scmp.lt.s32.totalorder %s22, 1
      %s339 = scalar_select %p338, %s22, 1
      %s340 = smul.addr %s337, 2
      %s341 = sadd.s32 %s339, %s340
      %s342 = scalar_lea.vmem %s4, %s341
      %p343 = scmp.lt.s32.totalorder %s21, 1
      %s344 = scalar_select %p343, %s21, 1
      %p345 = scmp.lt.s32.totalorder %s22, 1
      %s346 = scalar_select %p345, %s22, 1
      %s347 = smul.addr %s344, 2
      %s348 = sadd.s32 %s346, %s347
      %s349 = scalar_lea.vmem %s5, %s348
      %v350 = vld [vmem:[%s328] sm:$0x1]
      %v351 = vlaneseq
      %v352 = vand.u32 %v351, 127
      %s353 = smul.u32 %s22, 128
      %v354 = vstv %s353
      %v355 = vadd.s32 %v352, %v354
      %vm356 = vcmp.lt.s32.totalorder %v355, 256
      %vm357 = vcmp.ge.s32.totalorder %v350, 0
      %vm358 = vmand %vm356, %vm357
      %vm359 = vcmp.lt.s32.totalorder %v350, 4
      %vm360 = vmand %vm358, %vm359
      %v361 = vlaneseq
      %v362 = vshrl.u32 %v361, 7
      %v363 = vlaneseq
      %v364 = vshrl.u32 %v363, 7
      %v365 = vsub.s32 0, %v364
      %v366 = vrot.slane %v350, %v365
      %vm367 = vcmp.eq.s32.totalorder %v362, %v366
      %v368 = vld [vmem:[%s313] sm:$0xf]
      %vm369 = vcmask 1043456
      %v370 = vsel %vm369, %v368, -inf
      %v371 = vrot.slane %v370, 4
      %v372 = vmax.f32 %v370, %v371
      %v373 = vrot.slane %v372, 2
      %v374 = vmax.f32 %v372, %v373
      %v375 = vrot.slane %v374, 1
      %v376 = vmax.f32 %v374, %v375
      %v377 = vsub.f32 %v368, %v376
      %v378 = vmul.f32 %v377, 1.442695
      %v379 = vpow.pop %v378
      %v380 = vsel %vm369, %v379, 0.0
      %v381 = vrot.slane %v380, 4
      %v382 = vadd.f32 %v380, %v381
      %v383 = vrot.slane %v382, 2
      %v384 = vadd.f32 %v382, %v383
      %v385 = vrot.slane %v384, 1
      %v386 = vadd.f32 %v384, %v385
      %v387 = vlog2.pop %v386
      %v388 = vmul.f32 %v387, 0.6931472
      %v389 = vadd.f32 %v376, %v388
      %v390 = vsel %vm367, %v368, 0.0
      %v391 = vsel %vm369, %v390, 0.0
      %v392 = vrot.slane %v391, 4
      %v393 = vadd.f32 %v391, %v392
      %v394 = vrot.slane %v393, 2
      %v395 = vadd.f32 %v393, %v394
      %v396 = vrot.slane %v395, 1
      %v397 = vadd.f32 %v395, %v396
      %v398 = vsub.f32 %v389, %v397
      %v399 = vsel %vm360, %v398, 0.0
      %v400 = vadd.f32 %v399, 0.0
      %401 = vst [vmem:[%s335] sm:$0x1] %v400
      %v402 = vld [vmem:[%s321] sm:$0xf]
      %v403 = vsel %vm369, %v402, -inf
      %v404 = vrot.slane %v403, 4
      %v405 = vmax.f32 %v403, %v404
      %v406 = vrot.slane %v405, 2
      %v407 = vmax.f32 %v405, %v406
      %v408 = vrot.slane %v407, 1
      %v409 = vmax.f32 %v407, %v408
      %v410 = vsub.f32 %v402, %v409
      %v411 = vmul.f32 %v410, 1.442695
      %v412 = vpow.pop %v411
      %v413 = vsel %vm369, %v412, 0.0
      %v414 = vrot.slane %v413, 4
      %v415 = vadd.f32 %v413, %v414
      %v416 = vrot.slane %v415, 2
      %v417 = vadd.f32 %v415, %v416
      %v418 = vrot.slane %v417, 1
      %v419 = vadd.f32 %v417, %v418
      %v420 = vlog2.pop %v419
      %v421 = vmul.f32 %v420, 0.6931472
      %v422 = vadd.f32 %v409, %v421
      %v423 = vsel %vm367, %v402, 0.0
      %v424 = vsel %vm369, %v423, 0.0
      %v425 = vrot.slane %v424, 4
      %v426 = vadd.f32 %v424, %v425
      %v427 = vrot.slane %v426, 2
      %v428 = vadd.f32 %v426, %v427
      %v429 = vrot.slane %v428, 1
      %v430 = vadd.f32 %v428, %v429
      %v431 = vsub.f32 %v422, %v430
      %v432 = vsel %vm360, %v431, 0.0
      %v433 = vadd.f32 %v432, 0.0
      %434 = vst [vmem:[%s342] sm:$0x1] %v433
      %v435 = vsel %vm360, 1, 0
      %v436 = vcvt.s32.f32 %v435
      %v437 = vadd.f32 %v436, 0.0
      %438 = vst [vmem:[%s349] sm:$0x1] %v437
      %p439 = scmp.lt.s32.totalorder %s21, 1
      %s440 = scalar_select %p439, %s21, 1
      %p441 = scmp.lt.s32.totalorder %s22, 1
      %s442 = scalar_select %p441, %s22, 1
      %s443 = smul.addr %s440, 2
      %s444 = sadd.s32 %s442, %s443
      %s445 = scalar_lea.vmem %s3, %s444
      %p446 = scmp.lt.s32.totalorder %s21, 1
      %s447 = scalar_select %p446, %s21, 1
      %p448 = scmp.lt.s32.totalorder %s22, 1
      %s449 = scalar_select %p448, %s22, 1
      %s450 = smul.addr %s447, 2
      %s451 = sadd.s32 %s449, %s450
      %s452 = scalar_lea.vmem %s4, %s451
      %p453 = scmp.lt.s32.totalorder %s21, 1
      %s454 = scalar_select %p453, %s21, 1
      %p455 = scmp.lt.s32.totalorder %s22, 1
      %s456 = scalar_select %p455, %s22, 1
      %s457 = smul.addr %s454, 2
      %s458 = sadd.s32 %s456, %s457
      %s459 = scalar_lea.vmem %s5, %s458
      // Predicated region
      $region33: #{_seg_aux_ce.1} parent=31 // pred_check
        %p460 = pneg %p133
      $region34: #{_seg_aux_ce.1} parent=31 // pred_check_branch
        %462 = sbr.rel (%p460) target = $region36
      $region35: #{_seg_aux_ce.1} parent=31 // pred_region
        _
      $region36: #{_seg_aux_ce.1} parent=31 // pred_fallthru
        _
      // Predicated region
      $region37: #{_seg_aux_ce.1} parent=31 // pred_check
        %p463 = pneg %p161
      $region38: #{_seg_aux_ce.1} parent=31 // pred_check_branch
        %465 = sbr.rel (%p463) target = $region40
      $region39: #{_seg_aux_ce.1} parent=31 // pred_region
        _
      $region40: #{_seg_aux_ce.1} parent=31 // pred_fallthru
        _
      // Predicated region
      $region41: #{_seg_aux_ce.1} parent=31 // pred_check
        %p466 = pneg %p189
      $region42: #{_seg_aux_ce.1} parent=31 // pred_check_branch
        %468 = sbr.rel (%p466) target = $region44
      $region43: #{_seg_aux_ce.1} parent=31 // pred_region
        _
      $region44: #{_seg_aux_ce.1} parent=31 // pred_fallthru
        _
    $region32: #{_seg_aux_ce.1} parent=5 // pred_fallthru
      _
    %p469 = scmp.le.s32.totalorder 2, %s12
    // Predicated region
    $region45: #{_seg_aux_ce.1} parent=5 // pred_check
      %p470 = pneg %p469
    $region46: #{_seg_aux_ce.1} parent=5 // pred_check_branch
      %472 = sbr.rel (%p470) target = $region48
    $region47: #{_seg_aux_ce.1} parent=5 // pred_region
      %s473 = ssub.s32 %s12, 2
      // Predicated region
      $region49: #{_seg_aux_ce.1} parent=47 // pred_check
        %p474 = pneg %p139
      $region50: #{_seg_aux_ce.1} parent=47 // pred_check_branch
        %476 = sbr.rel (%p474) target = $region52
      $region51: #{_seg_aux_ce.1} parent=47 // pred_region
        %p477 = scmp.lt.s32.totalorder %s23, 1
        %s478 = scalar_select %p477, %s23, 1
        %p479 = scmp.lt.s32.totalorder %s24, 1
        %s480 = scalar_select %p479, %s24, 1
        %s481 = smul.addr %s478, 2
        %s482 = sadd.s32 %s480, %s481
        %s483 = scalar_lea.vmem %s3, %s482
      $region52: #{_seg_aux_ce.1} parent=47 // pred_fallthru
        _
      // Predicated region
      $region53: #{_seg_aux_ce.1} parent=47 // pred_check
        %p484 = pneg %p167
      $region54: #{_seg_aux_ce.1} parent=47 // pred_check_branch
        %486 = sbr.rel (%p484) target = $region56
      $region55: #{_seg_aux_ce.1} parent=47 // pred_region
        %p487 = scmp.lt.s32.totalorder %s23, 1
        %s488 = scalar_select %p487, %s23, 1
        %p489 = scmp.lt.s32.totalorder %s24, 1
        %s490 = scalar_select %p489, %s24, 1
        %s491 = smul.addr %s488, 2
        %s492 = sadd.s32 %s490, %s491
        %s493 = scalar_lea.vmem %s4, %s492
      $region56: #{_seg_aux_ce.1} parent=47 // pred_fallthru
        _
      // Predicated region
      $region57: #{_seg_aux_ce.1} parent=47 // pred_check
        %p494 = pneg %p195
      $region58: #{_seg_aux_ce.1} parent=47 // pred_check_branch
        %496 = sbr.rel (%p494) target = $region60
      $region59: #{_seg_aux_ce.1} parent=47 // pred_region
        %p497 = scmp.lt.s32.totalorder %s23, 1
        %s498 = scalar_select %p497, %s23, 1
        %p499 = scmp.lt.s32.totalorder %s24, 1
        %s500 = scalar_select %p499, %s24, 1
        %s501 = smul.addr %s498, 2
        %s502 = sadd.s32 %s500, %s501
        %s503 = scalar_lea.vmem %s5, %s502
      $region60: #{_seg_aux_ce.1} parent=47 // pred_fallthru
        _
    $region48: #{_seg_aux_ce.1} parent=5 // pred_fallthru
      _
  $region6: #{_seg_aux_ce.1} parent=0 // loop_footer
    %s16 = sadd.s32 1, %s12
  $region7: #{_seg_aux_ce.1} parent=0 // loop_footer_branch
    %11 = sbr.rel target = $region3
  $region8: #{_seg_aux_ce.1} parent=0 // loop_exit
    _

</llo_original>
